<compile_context>
chip_gen: v7x
topology: tpu7x:2x2x1
jax: 0.10.0
libtpu: 0.0.40
codegen_flags: <defaults>
</compile_context>

<pallas_src>
import math
from typing import Any, Dict, List, Sequence, Tuple

import jax
import jax.numpy as jnp
import numpy as np
from jax.experimental import pallas as pl
from jax.experimental.pallas import tpu as pltpu


def _numel(shape: Tuple[int, ...]) -> int:
    return int(math.prod(shape)) if len(shape) > 0 else 1


def _num_tensorcores_per_chip() -> int:
    """2 only on v7x (megacore split worthwhile); 1 on v5e/v6e. Conservative fallback: 1."""
    try:
        kind = jax.devices()[0].device_kind.lower()
        if "v7" in kind:
            return 2
    except Exception:
        pass
    try:
        ver = str(getattr(pltpu.get_tpu_info(), "chip_version", "")).lower()
        if "7" in ver:
            return 2
    except Exception:
        pass
    return 1


def _greedy_partition(byte_sizes: Sequence[int], num_bins: int) -> List[int]:
    """Static greedy bin assignment (largest-first) balancing cumulative bytes per bin."""
    order = sorted(range(len(byte_sizes)), key=lambda i: -byte_sizes[i])
    loads = [0] * num_bins
    owner = [0] * len(byte_sizes)
    for i in order:
        b = min(range(num_bins), key=lambda c: loads[c])
        owner[i] = b
        loads[b] += byte_sizes[i]
    return owner


def _make_dma_unpack_kernel(offsets: Sequence[int],
                            lengths: Sequence[int],
                            owners: Sequence[int],
                            issue_order: Sequence[int],
                            num_grid_steps: int):
    """Kernel: per-slice full-batch HBM->HBM DMA copies; only the live region is read.

    owners[i] is the static grid-step (TensorCore) owning slice i; issue_order lists
    slice indices largest-bytes-first so per-DMA issue latency hides under the big copies.
    """
    num_slices = len(offsets)

    def kernel(x_hbm, *rest):
        out_refs = rest[:num_slices]
        sem = rest[num_slices]

        def issue_and_wait(slice_ids):
            copies = []
            for i in slice_ids:
                cp = pltpu.make_async_copy(
                    x_hbm.at[:, pl.ds(offsets[i], lengths[i]), :],
                    out_refs[i],
                    sem.at[i],
                )
                cp.start()
                copies.append(cp)
            # All DMAs are in flight and overlap on the DMA engine; now drain.
            for cp in copies:
                cp.wait()

        if num_grid_steps == 1:
            # Single TensorCore (v5e/v6e): one grid step, every DMA full-batch, no
            # intermediate drain between halves.
            issue_and_wait(list(issue_order))
        else:
            # v7x: slice-partitioned megacore split.  Each core issues only its own
            # (full-batch) slices, so no DMA shrinks and load is byte-balanced.
            pid = pl.program_id(0)
            for core in range(num_grid_steps):
                mine = [i for i in issue_order if owners[i] == core]
                if not mine:
                    continue

                @pl.when(pid == core)
                def _(mine=mine):
                    issue_and_wait(mine)

    return kernel


def _unpack_slices_pallas(outer_seq_packed: jax.Array,
                          offsets: Sequence[int],
                          lengths: Sequence[int]) -> List[jax.Array]:
    """One pallas_call producing one (B, L_i, D) output per selected slice via direct DMAs."""
    B, _, D = outer_seq_packed.shape
    num_slices = len(offsets)
    itemsize = jnp.dtype(outer_seq_packed.dtype).itemsize
    slice_bytes = [B * ln * D * itemsize for ln in lengths]

    n_cores = _num_tensorcores_per_chip()
    n_grid = n_cores if (n_cores > 1 and num_slices > 1) else 1
    owners = _greedy_partition(slice_bytes, n_grid)
    issue_order = sorted(range(num_slices), key=lambda i: -slice_bytes[i])

    kernel = _make_dma_unpack_kernel(offsets, lengths, owners, issue_order, n_grid)

    out_shapes = tuple(
        jax.ShapeDtypeStruct((B, L, D), outer_seq_packed.dtype) for L in lengths
    )
    cost = pl.CostEstimate(
        flops=0,
        transcendentals=0,
        bytes_accessed=2 * int(sum(slice_bytes)),  # read live slices + write slices
    )

    # memory_space=pl.ANY keeps arrays in place (HBM for these sizes); the compiler may
    # place tiny arrays in VMEM, which is still correct.
    outs = pl.pallas_call(
        kernel,
        grid=(n_grid,),
        in_specs=[pl.BlockSpec(memory_space=pl.ANY)],
        out_specs=tuple(pl.BlockSpec(memory_space=pl.ANY) for _ in lengths),
        out_shape=out_shapes,
        scratch_shapes=[pltpu.SemaphoreType.DMA((num_slices,))],
        compiler_params=pltpu.CompilerParams(
            dimension_semantics=(("parallel",) if n_grid > 1 else ("arbitrary",)),
        ),
        cost_estimate=cost,
    )(outer_seq_packed)

    if not isinstance(outs, (tuple, list)):
        outs = (outs,)
    return list(outs)


def _unpack_slice_jax(outer_seq_packed: jax.Array, off: int, ln: int) -> jax.Array:
    """Plain static slice; XLA can fuse it into consumers (no materialized copy)."""
    return jax.lax.slice_in_dim(outer_seq_packed, off, off + ln, axis=1)


class SequenceUnpacker:
    """JAX/Pallas port of flextok SequenceUnpacker.

    `min_dma_bytes_per_slice` controls per-slice dispatch: slices smaller than this use
    plain JAX slices (fusable, zero-copy); larger slices are materialized by the Pallas
    DMA kernel.  The default keeps nearly everything on the fusable JAX path.
    """

    def __init__(self,
                 packed_seq_read_key: str,
                 inner_seq_write_keys: List[str],
                 inner_packed_shapes_read_key: str,
                 outer_packed_shapes_read_key: str,
                 min_dma_bytes_per_slice: int = 1 << 20):
        self.packed_seq_read_key = packed_seq_read_key
        self.inner_seq_write_keys = inner_seq_write_keys
        self.inner_packed_shapes_read_key = inner_packed_shapes_read_key
        self.outer_packed_shapes_read_key = outer_packed_shapes_read_key
        self.min_dma_bytes_per_slice = min_dma_bytes_per_slice

    def __call__(self, data_dict: Dict[str, Any]) -> Dict[str, Any]:
        outer_seq_packed = data_dict[self.packed_seq_read_key]
        outer_packed_shapes = data_dict[self.outer_packed_shapes_read_key]
        inner_packed_shapes = data_dict[self.inner_packed_shapes_read_key]

        B, N, D = outer_seq_packed.shape
        N_orig = sum(_numel(s) for s in outer_packed_shapes)
        num_padding_tokens = N - N_orig
        assert num_padding_tokens >= 0

        # Static (offset, length, target_shape) for every inner slice.  Padding trim is
        # implicit: offsets only cover [0, N_orig).
        flat_offsets: List[int] = []
        flat_lengths: List[int] = []
        flat_shapes: List[Tuple[int, ...]] = []
        outer_off = 0
        for outer_shape, inner_ps in zip(outer_packed_shapes, inner_packed_shapes):
            outer_len = _numel(outer_shape)
            inner_off = 0
            for inner_shape in inner_ps:
                ln = _numel(inner_shape)
                flat_offsets.append(outer_off + inner_off)
                flat_lengths.append(ln)
                flat_shapes.append(tuple(inner_shape))
                inner_off += ln
            assert inner_off == outer_len, "inner packed shapes must tile the outer shape"
            outer_off += outer_len
        assert outer_off == N_orig

        # Mixed dispatch: big slices -> Pallas DMA kernel, small slices -> fusable lax slice.
        itemsize = jnp.dtype(outer_seq_packed.dtype).itemsize
        num_total = len(flat_offsets)
        pallas_ids = [
            i for i in range(num_total)
            if B * flat_lengths[i] * D * itemsize >= self.min_dma_bytes_per_slice
        ]
        jax_ids = [i for i in range(num_total) if i not in set(pallas_ids)]

        flat_outs: List[Any] = [None] * num_total
        if pallas_ids:
            pallas_outs = _unpack_slices_pallas(
                outer_seq_packed,
                [flat_offsets[i] for i in pallas_ids],
                [flat_lengths[i] for i in pallas_ids],
            )
            for i, out in zip(pallas_ids, pallas_outs):
                flat_outs[i] = out
        for i in jax_ids:
            flat_outs[i] = _unpack_slice_jax(outer_seq_packed, flat_offsets[i], flat_lengths[i])

        # einops.unpack 'b * d' semantics: (B, numel(shape), D) -> (B, *shape, D).
        reshaped: List[jax.Array] = [
            out.reshape((B,) + shp + (D,)) for out, shp in zip(flat_outs, flat_shapes)
        ]

        # Regroup per outer group and scatter into the dict.
        inner_seqs_unpacked: List[List[jax.Array]] = []
        idx = 0
        for inner_ps in inner_packed_shapes:
            k = len(inner_ps)
            inner_seqs_unpacked.append(reshaped[idx:idx + k])
            idx += k

        for key_idx, write_key in enumerate(self.inner_seq_write_keys):
            data_dict[write_key] = [seq[key_idx] for seq in inner_seqs_unpacked]
        return data_dict


if __name__ == "__main__":
    # Small-but-representative example:
    #   B=2, D=128 (lane-dense hidden dim), two outer groups (registers + spatial patches)
    #   of lengths 68 (= 4 + 8*8) and 260 (= 4 + 16*16); N_orig=328 padded to N=336.
    B, D = 2, 128
    outer_packed_shapes = [(68,), (260,)]
    inner_packed_shapes = [
        [(4,), (8, 8)],      # registers + 8x8 patches
        [(4,), (16, 16)],    # registers + 16x16 patches
    ]
    N_orig = sum(_numel(s) for s in outer_packed_shapes)
    N = N_orig + 8  # 8 padding tokens

    key = jax.random.PRNGKey(0)
    outer_seq_packed = jax.random.normal(key, (B, N, D), dtype=jnp.float32)

    module = SequenceUnpacker(
        packed_seq_read_key="packed_seq",
        inner_seq_write_keys=["registers", "patches"],
        inner_packed_shapes_read_key="inner_packed_shapes",
        outer_packed_shapes_read_key="outer_packed_shapes",
        # 8 KiB threshold: the 4-token register slices (4 KiB) take the fusable JAX path,
        # the 64/256-token patch slices (64/256 KiB) exercise the Pallas DMA kernel.
        min_dma_bytes_per_slice=8 * 1024,
    )

    data_dict = {
        "packed_seq": outer_seq_packed,
        "outer_packed_shapes": outer_packed_shapes,
        "inner_packed_shapes": inner_packed_shapes,
    }
    out_dict = module(data_dict)

    # Block on all outputs.
    for k in ["registers", "patches"]:
        for arr in out_dict[k]:
            jax.block_until_ready(arr)

    # Reference check against plain numpy slicing (same semantics as einops.unpack).
    write_keys = ["registers", "patches"]
    x_np = np.asarray(outer_seq_packed)
    ref_by_key = {k: [] for k in write_keys}
    off = 0
    for inner_ps in inner_packed_shapes:
        for key_idx, shp in enumerate(inner_ps):
            ln = _numel(shp)
            ref = x_np[:, off:off + ln, :].reshape((B,) + tuple(shp) + (D,))
            ref_by_key[write_keys[key_idx]].append(ref)
            off += ln
    assert off == N_orig

    for k in write_keys:
        assert len(out_dict[k]) == len(ref_by_key[k])
        for got, ref in zip(out_dict[k], ref_by_key[k]):
            assert got.shape == ref.shape, (k, got.shape, ref.shape)
            np.testing.assert_allclose(np.asarray(got), ref, rtol=0, atol=0)

    # Shape checks matching the module's semantics.
    assert out_dict["registers"][0].shape == (B, 4, D)
    assert out_dict["registers"][1].shape == (B, 4, D)
    assert out_dict["patches"][0].shape == (B, 8, 8, D)
    assert out_dict["patches"][1].shape == (B, 16, 16, D)

    print("KERNEL_OK")
</pallas_src>

<mosaic_0001>
module attributes {stable_mosaic.version = 11 : i64} {
  func.func @kernel(%arg0: i32, %arg1: memref<2x336x128xf32, #tpu.memory_space<any>>, %arg2: memref<2x64x128xf32, #tpu.memory_space<any>>, %arg3: memref<2x256x128xf32, #tpu.memory_space<any>>, %arg4: memref<2x!tpu.dma_semaphore, #tpu.memory_space<semaphore_mem>>) attributes {dimension_semantics = [#tpu.dimension_semantics<arbitrary>], iteration_bounds = array<i64: 1>, scalar_prefetch = 0 : i64, scratch_operands = 1 : i64, tpu.core_type = #tpu.core_type<tc>, window_params = [{}, {}, {}]} {
    %c1_i32 = arith.constant 1 : i32
    %c0_i32 = arith.constant 0 : i32
    %c72_i32 = arith.constant 72 : i32
    %c0_i32_0 = arith.constant 0 : i32
    %0 = tpu.memref_slice %arg1[%c0_i32, %c72_i32, %c0_i32_0] : memref<2x336x128xf32, #tpu.memory_space<any>> -> memref<2x256x128xf32, #tpu.memory_space<any>>
    %1 = tpu.memref_slice %arg4[%c1_i32] : memref<2x!tpu.dma_semaphore, #tpu.memory_space<semaphore_mem>> -> memref<1x!tpu.dma_semaphore, #tpu.memory_space<semaphore_mem>>
    %2 = tpu.memref_squeeze %1 : memref<1x!tpu.dma_semaphore, #tpu.memory_space<semaphore_mem>> -> memref<!tpu.dma_semaphore, #tpu.memory_space<semaphore_mem>>
    tpu.enqueue_dma source(%0 : memref<2x256x128xf32, #tpu.memory_space<any>>) target(%arg3 : memref<2x256x128xf32, #tpu.memory_space<any>>) target_semaphore(%2 : memref<!tpu.dma_semaphore, #tpu.memory_space<semaphore_mem>>)
    %c0_i32_1 = arith.constant 0 : i32
    %c0_i32_2 = arith.constant 0 : i32
    %c4_i32 = arith.constant 4 : i32
    %c0_i32_3 = arith.constant 0 : i32
    %3 = tpu.memref_slice %arg1[%c0_i32_2, %c4_i32, %c0_i32_3] : memref<2x336x128xf32, #tpu.memory_space<any>> -> memref<2x64x128xf32, #tpu.memory_space<any>>
    %4 = tpu.memref_slice %arg4[%c0_i32_1] : memref<2x!tpu.dma_semaphore, #tpu.memory_space<semaphore_mem>> -> memref<1x!tpu.dma_semaphore, #tpu.memory_space<semaphore_mem>>
    %5 = tpu.memref_squeeze %4 : memref<1x!tpu.dma_semaphore, #tpu.memory_space<semaphore_mem>> -> memref<!tpu.dma_semaphore, #tpu.memory_space<semaphore_mem>>
    tpu.enqueue_dma source(%3 : memref<2x64x128xf32, #tpu.memory_space<any>>) target(%arg2 : memref<2x64x128xf32, #tpu.memory_space<any>>) target_semaphore(%5 : memref<!tpu.dma_semaphore, #tpu.memory_space<semaphore_mem>>)
    %c1_i32_4 = arith.constant 1 : i32
    %c0_i32_5 = arith.constant 0 : i32
    %c72_i32_6 = arith.constant 72 : i32
    %c0_i32_7 = arith.constant 0 : i32
    %6 = tpu.memref_slice %arg1[%c0_i32_5, %c72_i32_6, %c0_i32_7] : memref<2x336x128xf32, #tpu.memory_space<any>> -> memref<2x256x128xf32, #tpu.memory_space<any>>
    %7 = tpu.memref_slice %arg4[%c1_i32_4] : memref<2x!tpu.dma_semaphore, #tpu.memory_space<semaphore_mem>> -> memref<1x!tpu.dma_semaphore, #tpu.memory_space<semaphore_mem>>
    %8 = tpu.memref_squeeze %7 : memref<1x!tpu.dma_semaphore, #tpu.memory_space<semaphore_mem>> -> memref<!tpu.dma_semaphore, #tpu.memory_space<semaphore_mem>>
    tpu.wait_dma2 semaphore(%8 : memref<!tpu.dma_semaphore, #tpu.memory_space<semaphore_mem>>) src(%6 : memref<2x256x128xf32, #tpu.memory_space<any>>) dst(%arg3 : memref<2x256x128xf32, #tpu.memory_space<any>>)
    %c0_i32_8 = arith.constant 0 : i32
    %c0_i32_9 = arith.constant 0 : i32
    %c4_i32_10 = arith.constant 4 : i32
    %c0_i32_11 = arith.constant 0 : i32
    %9 = tpu.memref_slice %arg1[%c0_i32_9, %c4_i32_10, %c0_i32_11] : memref<2x336x128xf32, #tpu.memory_space<any>> -> memref<2x64x128xf32, #tpu.memory_space<any>>
    %10 = tpu.memref_slice %arg4[%c0_i32_8] : memref<2x!tpu.dma_semaphore, #tpu.memory_space<semaphore_mem>> -> memref<1x!tpu.dma_semaphore, #tpu.memory_space<semaphore_mem>>
    %11 = tpu.memref_squeeze %10 : memref<1x!tpu.dma_semaphore, #tpu.memory_space<semaphore_mem>> -> memref<!tpu.dma_semaphore, #tpu.memory_space<semaphore_mem>>
    tpu.wait_dma2 semaphore(%11 : memref<!tpu.dma_semaphore, #tpu.memory_space<semaphore_mem>>) src(%9 : memref<2x64x128xf32, #tpu.memory_space<any>>) dst(%arg2 : memref<2x64x128xf32, #tpu.memory_space<any>>)
    return
  }
}

</mosaic_0001>

<llo_original>
// kernel: tpu_custom_call.1
$region0: #{tpu_custom_call.1}
  #allocation0 [shape = 'u32[]', space=smem, size = 0x4, offset = 0x4, fixed_abs, tag = 'smem constant byte address 0x4 - core index']
  #allocation1 [shape = 'u32[144,128]{1,0:T(1,128)}', space=vmem, size = 0x12000, scoped, tag = 'internal scratch']
  #allocation2 [shape = 's32[2]{0}', space=sflag, size = 0x8, scoped, tag = 'scratch operand']
  #allocation3 [shape = 's32[]', space=sflag, size = 0x4, offset = 0, fixed_abs, tag = 'sflag constant byte address 0x0 - dummy sync flag']
  #allocation5 [shape = 's32[]', space=sflag, size = 0x4, offset = 0, fixed_abs, tag = 'sflag constant byte address 0x0 - dummy sync flag']
  %s0 = inlined_call_operand.hbm [shape: f32[2,336,128], index: 0, kind: input, shape index: {}]
  %s1 = inlined_call_operand.hbm [shape: f32[2,64,128], index: 1, kind: output, shape index: {0}]
  %s2 = inlined_call_operand.hbm [shape: f32[2,256,128], index: 2, kind: output, shape index: {1}]
  %3 = xla_tuple %s1, %s2
  %s4 = sld [smem:[#allocation0]]
  $region2: #{tpu_custom_call.1} parent=0
    _
  %s6 = ssub.s32 1, %s4
  %s7 = scalar_select 0, %s6, %s4
  $region1: #{tpu_custom_call.1} parent=0
    #allocation4 [shape = 'u32[3]{0}', space=smem, size = 0xc, scoped, tag = 'DMA stride descriptor']
    #allocation6 [shape = 'u32[3]{0}', space=smem, size = 0xc, scoped, tag = 'DMA stride descriptor']
    %s8 = scalar_lea.hbm %s0, 1152
    %s9 = scalar_lea.sflag [#allocation2], 1
    %s11 = sshll.u32 1, 14
    %s12 = sxor.u32 4294967295, %s11
    %s15 = sshll.u32 3, 24
    %s16 = sxor.u32 4294967295, %s15
    %s17 = sand.u32 0, %s16
    %s19 = sor.u32 %s17, 0
    %22 = sst [smem:[#allocation4]] 5376
    %s23 = scalar_lea.smem [#allocation4], 1
    %24 = sst [smem:[%s23]] 4096
    %s25 = scalar_lea.smem [#allocation4], 2
    %26 = sst [smem:[%s25]] 256
    %28 = dma.general %s8, 8192, %s2, %s9, [#allocation3], [#allocation4], %s19, 0
    %s29 = scalar_lea.hbm %s0, 64
    %s31 = sshll.u32 1, 14
    %s32 = sxor.u32 4294967295, %s31
    %s35 = sshll.u32 3, 24
    %s36 = sxor.u32 4294967295, %s35
    %s37 = sand.u32 0, %s36
    %s39 = sor.u32 %s37, 0
    %42 = sst [smem:[#allocation6]] 5376
    %s43 = scalar_lea.smem [#allocation6], 1
    %44 = sst [smem:[%s43]] 1024
    %s45 = scalar_lea.smem [#allocation6], 2
    %46 = sst [smem:[%s45]] 64
    %48 = dma.general %s29, 2048, %s1, [#allocation2], [#allocation5], [#allocation6], %s39, 0
    %s49 = smul.u32 2, 256
    %s50 = smul.u32 %s49, 1
    %s51 = sshll.u32 %s50, 4
    %52 = dma.done %s9, %s51
    %s53 = smul.u32 2, 64
    %s54 = smul.u32 %s53, 1
    %s55 = sshll.u32 %s54, 4
    %56 = dma.done [#allocation2], %s55
  %57 = vsyncmov [#allocation2]
  %s58 = vpop.sfrf %57
  %p59 = scmp.eq.s32.totalorder %s58, 0
  %p60 = pneg %p59
  %62 = shalt.err (%p60)
  %s63 = scalar_lea.sflag [#allocation2], 1
  %64 = vsyncmov %s63
  %s65 = vpop.sfrf %64
  %p66 = scmp.eq.s32.totalorder %s65, 0
  %p67 = pneg %p66
  %69 = shalt.err (%p67)

</llo_original>
